<compile_context>
chip_gen: v5e
topology: v5e:2x2
jax: 0.10.0
libtpu: 0.0.40
codegen_flags: <defaults>
</compile_context>

<pallas_src>
import numpy as np
import jax
import jax.numpy as jnp
from jax.experimental import pallas as pl
from jax.experimental.pallas import tpu as pltpu


def _round_up(a, b):
    return ((a + b - 1) // b) * b


def _skipcat_kernel(x_ref, s_ref, o_ref):
    # x_ref: (TN, Wx), s_ref: (TN, Ws), o_ref: (TN, Wx + Ws)
    wx = x_ref.shape[1]
    # Two dense stores into disjoint column ranges of the output tile.
    # Dtype promotion (if any) is done here on the VPU, hidden under the DMAs,
    # rather than as a separate XLA op doing an extra HBM read+write.
    o_ref[:, :wx] = x_ref[...].astype(o_ref.dtype)
    o_ref[:, wx:] = s_ref[...].astype(o_ref.dtype)


def _vmem_budgets():
    """(double-buffered working-set budget, scoped-VMEM limit) from chip VMEM size."""
    try:
        vmem_cap = int(pltpu.get_tpu_info().vmem_capacity_bytes)
    except Exception:
        vmem_cap = 64 * 1024 * 1024            # conservative default (v7x per-core)
    budget = min((2 * vmem_cap) // 5, 48 * 1024 * 1024)   # 48 MiB v5e/v6e, ~25 MiB v7x
    limit = min((3 * vmem_cap) // 4, 96 * 1024 * 1024)    # 96 MiB v5e/v6e, 48 MiB v7x
    return budget, limit


def skip_cat(x, skip, dim=-3, *, min_pallas_bytes=1 << 20):
    """torch.cat([x, skip], dim=dim) for same-rank arrays (channel concat by default)."""
    assert x.ndim == skip.ndim, "rank mismatch"
    d = dim % x.ndim
    assert x.shape[:d] == skip.shape[:d] and x.shape[d + 1:] == skip.shape[d + 1:], (
        "all dims except the concat dim must match")

    out_dtype = jnp.promote_types(x.dtype, skip.dtype)
    out_shape = x.shape[:d] + (x.shape[d] + skip.shape[d],) + x.shape[d + 1:]

    lead = int(np.prod(x.shape[:d], dtype=np.int64))
    wx = int(np.prod(x.shape[d:], dtype=np.int64))
    ws = int(np.prod(skip.shape[d:], dtype=np.int64))
    wo = wx + ws

    isx = jnp.dtype(x.dtype).itemsize
    iss = jnp.dtype(skip.dtype).itemsize
    iso = jnp.dtype(out_dtype).itemsize
    out_bytes = lead * wo * iso

    # Fast path: fixed pallas_call / pipeline overhead dominates tiny copies;
    # XLA's native concat is already just two DMAs.
    if out_bytes < min_pallas_bytes:
        return jnp.concatenate([x.astype(out_dtype), skip.astype(out_dtype)], axis=d)

    budget, vmem_limit = _vmem_budgets()

    # Per-row VMEM cost of a grid step: x + skip + out tiles, double-buffered.
    per_row = 2 * (wx * isx + ws * iss + wo * iso)
    cap_rows = budget // per_row

    # Sublane multiple: sub-32-bit dtypes pack along sublanes (8 f32, 16 bf16, 32 i8).
    min_item = min(isx, iss, iso)
    sub = 8 * max(1, 4 // min_item)

    if cap_rows < min(sub, lead):
        # A single flattened row (wx + ws elements) is too wide to stage through VMEM.
        # TODO(synk): tile the flattened tail (per-channel column blocks / manual HBM
        # DMA) instead of deferring these huge-CHW shapes to XLA's concatenate.
        return jnp.concatenate([x.astype(out_dtype), skip.astype(out_dtype)], axis=d)

    if lead <= cap_rows and lead < 2 * sub:
        # Tiny leading extent: one full-extent tile (legal block even if lead % 8 != 0).
        tn = lead
    else:
        # Aim for >= 4 row tiles so both v7x TensorCores get work, capped by the
        # VMEM budget, with tn a multiple of the packed sublane count.
        want = _round_up(pl.cdiv(lead, 4), sub)
        tn = max(sub, min(want, (cap_rows // sub) * sub))

    grid = (pl.cdiv(lead, tn),)

    # Free (view) reshapes -- no wrapper-side transposes, so HBM traffic is exactly
    # one read of each input plus one write of the output.
    x_flat = x.reshape(lead, wx)
    s_flat = skip.reshape(lead, ws)

    # NOTE: if wx % 128 != 0 the second store is lane-misaligned (masked stores on the
    # boundary vreg).  Still correct; the kernel stays HBM-DMA bound.
    out_flat = pl.pallas_call(
        _skipcat_kernel,
        out_shape=jax.ShapeDtypeStruct((lead, wo), out_dtype),
        grid=grid,
        in_specs=[
            pl.BlockSpec((tn, wx), lambda i: (i, 0)),
            pl.BlockSpec((tn, ws), lambda i: (i, 0)),
        ],
        out_specs=pl.BlockSpec((tn, wo), lambda i: (i, 0)),
        compiler_params=pltpu.CompilerParams(
            dimension_semantics=("parallel",),        # shard row tiles across TCs (v7x)
            vmem_limit_bytes=int(vmem_limit),
        ),
        cost_estimate=pl.CostEstimate(
            flops=0,
            transcendentals=0,
            bytes_accessed=int(lead * (wx * isx + ws * iss + wo * iso)),
        ),
    )(x_flat, s_flat)

    return out_flat.reshape(out_shape)


if __name__ == "__main__":
    key = jax.random.PRNGKey(0)
    k1, k2, k3, k4, k5 = jax.random.split(key, 5)

    # 1) U-Net-style skip concat, NCHW, dim=-3 (channels); force the Pallas path.
    x = jax.random.normal(k1, (2, 4, 16, 16), jnp.float32)
    skip = jax.random.normal(k2, (2, 4, 16, 16), jnp.float32)
    y = jax.block_until_ready(skip_cat(x, skip, min_pallas_bytes=0))
    y_ref = jnp.concatenate([x, skip], axis=-3)
    assert y.shape == (2, 8, 16, 16), y.shape
    assert np.array_equal(np.asarray(y), np.asarray(y_ref))

    # 2) Unequal channel counts + mixed dtypes (exercises the in-kernel cast).
    skip2 = jax.random.normal(k3, (2, 6, 16, 16), jnp.float32).astype(jnp.bfloat16)
    y2 = jax.block_until_ready(skip_cat(x, skip2, dim=-3, min_pallas_bytes=0))
    y2_ref = jnp.concatenate([x, skip2.astype(jnp.float32)], axis=-3)
    assert y2.shape == (2, 10, 16, 16), y2.shape
    assert np.array_equal(np.asarray(y2), np.asarray(y2_ref))

    # 3) Larger leading extent -> multiple row tiles on the "parallel" grid axis.
    x3 = jax.random.normal(k4, (32, 4, 16, 16), jnp.float32)
    skip3 = jax.random.normal(k5, (32, 4, 16, 16), jnp.float32)
    y3 = jax.block_until_ready(skip_cat(x3, skip3, min_pallas_bytes=0))
    y3_ref = jnp.concatenate([x3, skip3], axis=-3)
    assert y3.shape == (32, 8, 16, 16), y3.shape
    assert np.array_equal(np.asarray(y3), np.asarray(y3_ref))

    # 4) Default small-tensor fast path (jnp.concatenate) still matches.
    y4 = jax.block_until_ready(skip_cat(x, skip))
    assert np.array_equal(np.asarray(y4), np.asarray(y_ref))

    print("KERNEL_OK")
</pallas_src>

<mosaic_0001>
module attributes {stable_mosaic.version = 11 : i64} {
  func.func @_skipcat_kernel(%arg0: i32, %arg1: memref<2x1024xf32, #tpu.memory_space<vmem>>, %arg2: memref<2x1024xf32, #tpu.memory_space<vmem>>, %arg3: memref<2x2048xf32, #tpu.memory_space<vmem>>) attributes {dimension_semantics = [#tpu.dimension_semantics<parallel>], iteration_bounds = array<i64: 1>, scalar_prefetch = 0 : i64, scratch_operands = 0 : i64, tpu.core_type = #tpu.core_type<tc>, window_params = [{transform_indices = @transform_0, window_bounds = array<i64: 2, 1024>}, {transform_indices = @transform_1, window_bounds = array<i64: 2, 1024>}, {transform_indices = @transform_2, window_bounds = array<i64: 2, 2048>}]} {
    %c0 = arith.constant 0 : index
    %c0_0 = arith.constant 0 : index
    %0 = vector.load %arg1[%c0, %c0_0] : memref<2x1024xf32, #tpu.memory_space<vmem>>, vector<2x1024xf32>
    %c0_1 = arith.constant 0 : index
    %c0_2 = arith.constant 0 : index
    %1 = vector.load %arg3[%c0_1, %c0_2] : memref<2x2048xf32, #tpu.memory_space<vmem>>, vector<2x1024xf32>
    tpu.vector_store %arg3[%c0_1, %c0_2], %0 {strides = array<i32>} : memref<2x2048xf32, #tpu.memory_space<vmem>>, vector<2x1024xf32>,
    %c0_3 = arith.constant 0 : index
    %c0_4 = arith.constant 0 : index
    %2 = vector.load %arg2[%c0_3, %c0_4] : memref<2x1024xf32, #tpu.memory_space<vmem>>, vector<2x1024xf32>
    %c0_5 = arith.constant 0 : index
    %c1024 = arith.constant 1024 : index
    %3 = vector.load %arg3[%c0_5, %c1024] : memref<2x2048xf32, #tpu.memory_space<vmem>>, vector<2x1024xf32>
    tpu.vector_store %arg3[%c0_5, %c1024], %2 {strides = array<i32>} : memref<2x2048xf32, #tpu.memory_space<vmem>>, vector<2x1024xf32>,
    return
  }
  func.func @transform_0(%arg0: i32) -> (i32, i32) {
    %c0_i32 = arith.constant 0 : i32
    %c0_i32_0 = arith.constant 0 : i32
    return %arg0, %c0_i32 : i32, i32
  }
  func.func @transform_1(%arg0: i32) -> (i32, i32) {
    %c0_i32 = arith.constant 0 : i32
    %c0_i32_0 = arith.constant 0 : i32
    return %arg0, %c0_i32 : i32, i32
  }
  func.func @transform_2(%arg0: i32) -> (i32, i32) {
    %c0_i32 = arith.constant 0 : i32
    %c0_i32_0 = arith.constant 0 : i32
    return %arg0, %c0_i32 : i32, i32
  }
}

</mosaic_0001>

<llo_original>
// kernel: tpu_custom_call.1
$region0: #{tpu_custom_call.1}
  #allocation0 [shape = 'u32[]', space=smem, size = 0x4, offset = 0x4, fixed_abs, tag = 'smem constant byte address 0x4 - core index']
  #allocation1 [shape = 'u32[72,128]{1,0:T(1,128)}', space=vmem, size = 0x9000, scoped, tag = 'internal scratch']
  %s0 = inlined_call_operand.hbm [shape: f32[2,1024], index: 0, kind: input, shape index: {}]
  %s1 = inlined_call_operand.hbm [shape: f32[2,1024], index: 1, kind: input, shape index: {}]
  %s2 = inlined_call_operand.hbm [shape: f32[2,2048], index: 2, kind: output, shape index: {}]
  %s3 = sld [smem:[#allocation0]]
  $region26: #{tpu_custom_call.1} parent=0
    _
  %s5 = ssub.s32 1, %s3
  %s6 = scalar_select 0, %s5, %s3
  $region1: #{tpu_custom_call.1} parent=0
    #allocation2 [shape = 'u8[8192]{0}', space=vmem, size = 0x2000, scoped, tag = 'input window, operand 0, single buffered']
    #allocation3 [shape = 's32[1]{0}', space=sflag, size = 0x4, scoped, tag = 'scoped memory for tpu_custom_call.1']
    #allocation4 [shape = 's32[1]{0}', space=sflag, size = 0x4, scoped, tag = 'scoped memory for tpu_custom_call.1']
    #allocation5 [shape = 'u8[8192]{0}', space=vmem, size = 0x2000, scoped, tag = 'input window, operand 1, single buffered']
    #allocation6 [shape = 's32[1]{0}', space=sflag, size = 0x4, scoped, tag = 'scoped memory for tpu_custom_call.1']
    #allocation7 [shape = 'u8[16384]{0}', space=vmem, size = 0x4000, scoped, tag = 'output window, operand 0, single buffered']
    %7 = vsyncpa [#allocation3], 0
    %8 = vsyncpa [#allocation6], 0
    %9 = vsyncpa [#allocation4], 0
    // Predicated region
    $region2: #{tpu_custom_call.1} parent=1 // pred_check
      _
    $region3: #{tpu_custom_call.1} parent=1 // pred_check_branch
      %11 = sbr.rel (0) target = $region5
    $region4: #{tpu_custom_call.1} parent=1 // pred_region
      %13 = vsyncadd [#allocation3], 0
      %s15 = sshll.u32 %s0, 4
      %s16 = int_to_ptr.hbm [resolvable:$true] %s15
      %s17 = sshll.u32 [#allocation2], 4
      %s18 = int_to_ptr.vmem [resolvable:$true] %s17
      %20 = dma.hbm_to_vmem [thread:$0]  %s16, 256, %s18, [#allocation3]
    $region5: #{tpu_custom_call.1} parent=1 // pred_fallthru
      _
    // Predicated region
    $region6: #{tpu_custom_call.1} parent=1 // pred_check
      _
    $region7: #{tpu_custom_call.1} parent=1 // pred_check_branch
      %22 = sbr.rel (0) target = $region9
    $region8: #{tpu_custom_call.1} parent=1 // pred_region
      %24 = vsyncadd [#allocation6], 0
      %s26 = sshll.u32 %s1, 4
      %s27 = int_to_ptr.hbm [resolvable:$true] %s26
      %s28 = sshll.u32 [#allocation5], 4
      %s29 = int_to_ptr.vmem [resolvable:$true] %s28
      %31 = dma.hbm_to_vmem [thread:$0]  %s27, 256, %s29, [#allocation6]
    $region9: #{tpu_custom_call.1} parent=1 // pred_fallthru
      _
    // Predicated region
    $region10: #{tpu_custom_call.1} parent=1 // pred_check
      _
    $region11: #{tpu_custom_call.1} parent=1 // pred_check_branch
      %33 = sbr.rel (0) target = $region13
    $region12: #{tpu_custom_call.1} parent=1 // pred_region
      %35 = dma.done [#allocation3], 256
    $region13: #{tpu_custom_call.1} parent=1 // pred_fallthru
      _
    // Predicated region
    $region14: #{tpu_custom_call.1} parent=1 // pred_check
      _
    $region15: #{tpu_custom_call.1} parent=1 // pred_check_branch
      %37 = sbr.rel (0) target = $region17
    $region16: #{tpu_custom_call.1} parent=1 // pred_region
      %39 = dma.done [#allocation6], 256
    $region17: #{tpu_custom_call.1} parent=1 // pred_fallthru
      _
    %v40 = vld [vmem:[#allocation2] sm:$0xff]
    %v41 = vld [vmem:[#allocation2 + $0x8] sm:$0xff]
    %42 = vst [vmem:[#allocation7] sm:$0xff] %v40
    %43 = vst [vmem:[#allocation7 + $0x8] sm:$0xff] %v41
    %v44 = vld [vmem:[#allocation5] sm:$0xff]
    %v45 = vld [vmem:[#allocation5 + $0x8] sm:$0xff]
    %46 = vst [vmem:[#allocation7 + $0x10] sm:$0xff] %v44
    %47 = vst [vmem:[#allocation7 + $0x18] sm:$0xff] %v45
    // Predicated region
    $region18: #{tpu_custom_call.1} parent=1 // pred_check
      _
    $region19: #{tpu_custom_call.1} parent=1 // pred_check_branch
      %49 = sbr.rel (0) target = $region21
    $region20: #{tpu_custom_call.1} parent=1 // pred_region
      %51 = vsyncadd [#allocation4], 0
      %s53 = sshll.u32 [#allocation7], 4
      %s54 = int_to_ptr.vmem [resolvable:$true] %s53
      %s55 = sshll.u32 %s2, 4
      %s56 = int_to_ptr.hbm [resolvable:$true] %s55
      %58 = dma.vmem_to_hbm [thread:$0]  %s54, 512, %s56, [#allocation4]
    $region21: #{tpu_custom_call.1} parent=1 // pred_fallthru
      _
    // Predicated region
    $region22: #{tpu_custom_call.1} parent=1 // pred_check
      _
    $region23: #{tpu_custom_call.1} parent=1 // pred_check_branch
      %60 = sbr.rel (0) target = $region25
    $region24: #{tpu_custom_call.1} parent=1 // pred_region
      %62 = dma.done [#allocation4], 512
    $region25: #{tpu_custom_call.1} parent=1 // pred_fallthru
      _
    %63 = vsyncpa [#allocation3], 1
    %64 = vsyncpa [#allocation6], 1
    %65 = vsyncpa [#allocation4], 1

</llo_original>
